<compile_context>
chip_gen: v7x
topology: tpu7x:2x2x1
jax: 0.10.0
libtpu: 0.0.40
codegen_flags: <defaults>
</compile_context>

<pallas_src>
import jax
import jax.numpy as jnp
from jax.experimental import pallas as pl
from jax.experimental.pallas import tpu as pltpu


def _round_up(x, m):
    return ((x + m - 1) // m) * m


def _choose_tile(batch, block_rows):
    """Pick a lane-aligned (multiple of 128) batch tile and padded batch."""
    b128 = _round_up(batch, 128)
    bm = min(block_rows, b128)
    # v7x has 2 TensorCores: if one tile would swallow the whole (large) batch,
    # split into 2 grid steps so the "parallel" axis can shard across cores.
    if bm == b128 and b128 >= 512:
        bm = _round_up(b128 // 2, 128)
    b_pad = _round_up(b128, bm)
    return bm, b_pad


def q_mlp_kernel(x_ref, w1_ref, b1_ref, w2_ref, b2_ref, w3_ref, b3_ref, o_ref):
    """Fused Q MLP on one batch tile (batch along lanes).

    x_ref  : (K_pad, bm)  bf16   -- cat([state, action]).T, K padded to 16
    w1_ref : (H, K_pad)   bf16   -- layer-1 weight, transposed, K padded
    w2_ref : (H, H)       bf16
    w3_ref : (H, 1)       f32    -- final layer as a column (VPU/XLU path)
    b*_ref : column biases, f32
    o_ref  : (1, bm)      f32    -- lane-dense output row
    """
    # ---- layer 1: single fused-concat matmul (bf16 operands, f32 acc) ----
    h1 = jnp.dot(w1_ref[...], x_ref[...], preferred_element_type=jnp.float32)
    h1 = jnp.maximum(h1 + b1_ref[...], 0.0)                      # (H, bm)

    # ---- layer 2 ----
    h2 = jnp.dot(w2_ref[...], h1.astype(jnp.bfloat16),
                 preferred_element_type=jnp.float32)
    h2 = jnp.maximum(h2 + b2_ref[...], 0.0)                      # (H, bm)

    # ---- layer 3 (out_features = 1): VPU multiply + sublane reduction ----
    # Produces the (1, bm) row directly -> unmasked, lane-dense stores.
    o_ref[...] = jnp.sum(h2 * w3_ref[...], axis=0, keepdims=True) + b3_ref[...]


def prepare_q_params(params):
    """One-time weight preprocessing (hoisted out of the forward path)."""
    w1, b1, w2, b2, w3, b3 = params          # w*: [fan_in, fan_out], b*: [fan_out]
    K, H = w1.shape
    K_pad = _round_up(K, 16)                 # bf16 packs 2 rows / sublane
    w1t = jnp.pad(w1.T.astype(jnp.bfloat16), ((0, 0), (0, K_pad - K)))  # (H, K_pad)
    w2t = w2.T.astype(jnp.bfloat16)                                     # (H, H)
    b1c = b1.reshape(H, 1).astype(jnp.float32)
    b2c = b2.reshape(H, 1).astype(jnp.float32)
    w3c = w3.reshape(H, 1).astype(jnp.float32)                          # column
    b3c = b3.reshape(1, 1).astype(jnp.float32)
    return (w1t, b1c, w2t, b2c, w3c, b3c, K_pad)


def q_forward(state, action, prep, *, block_rows=2048):
    """Equivalent of Q.forward(state, action) = MLP(cat([state, action], 1))."""
    w1t, b1c, w2t, b2c, w3c, b3c, K_pad = prep
    B, Ds = state.shape
    Da = action.shape[1]
    K = Ds + Da
    H = w2t.shape[0]

    bm, B_pad = _choose_tile(B, block_rows)

    # cat + K-pad + transpose: batch goes on the lane axis.  Tiny (B x 16 bf16).
    x = jnp.concatenate([state, action], axis=1).astype(jnp.bfloat16)
    x = jnp.pad(x, ((0, B_pad - B), (0, K_pad - K)))
    x_t = x.T                                                    # (K_pad, B_pad)

    grid = (B_pad // bm,)
    out = pl.pallas_call(
        q_mlp_kernel,
        out_shape=jax.ShapeDtypeStruct((1, B_pad), jnp.float32),
        grid_spec=pltpu.PrefetchScalarGridSpec(
            num_scalar_prefetch=0,
            grid=grid,
            in_specs=[
                pl.BlockSpec((K_pad, bm), lambda i: (0, i)),   # input tile
                pl.BlockSpec((H, K_pad), lambda i: (0, 0)),    # W1^T (resident)
                pl.BlockSpec((H, 1), lambda i: (0, 0)),        # b1
                pl.BlockSpec((H, H), lambda i: (0, 0)),        # W2^T (resident)
                pl.BlockSpec((H, 1), lambda i: (0, 0)),        # b2
                pl.BlockSpec((H, 1), lambda i: (0, 0)),        # w3 column
                pl.BlockSpec((1, 1), lambda i: (0, 0)),        # b3
            ],
            out_specs=pl.BlockSpec((1, bm), lambda i: (0, i)),  # lane-dense row
        ),
        compiler_params=pltpu.CompilerParams(
            dimension_semantics=("parallel",)),   # shard batch tiles across TCs
    )(x_t, w1t, b1c, w2t, b2c, w3c, b3c)
    return out[0, :B, None]                                      # (B, 1)


def init_q_params(key, input_dims, n_actions, hidden=256):
    """Deterministic init mimicking nn.Linear default (U[-1/sqrt(fan_in), +])."""
    d_in = input_dims + n_actions

    def linear(key, fan_in, fan_out):
        kw, kb = jax.random.split(key)
        bound = 1.0 / jnp.sqrt(jnp.float32(fan_in))
        w = jax.random.uniform(kw, (fan_in, fan_out), jnp.float32, -bound, bound)
        b = jax.random.uniform(kb, (fan_out,), jnp.float32, -bound, bound)
        return w, b

    k1, k2, k3 = jax.random.split(key, 3)
    w1, b1 = linear(k1, d_in, hidden)
    w2, b2 = linear(k2, hidden, hidden)
    w3, b3 = linear(k3, hidden, 1)
    return (w1, b1, w2, b2, w3, b3)


# TODO(synk): save_checkpoint / load_checkpoint are host-side file I/O, not a
# kernel concern; they are intentionally not implemented here.

if __name__ == "__main__":
    key = jax.random.PRNGKey(0)
    k_state, k_action, k_params = jax.random.split(key, 3)

    batch = 8
    input_dims = 8
    n_actions = 4

    state = jax.random.normal(k_state, (batch, input_dims), jnp.float32)
    action = jax.random.normal(k_action, (batch, n_actions), jnp.float32)
    params = init_q_params(k_params, input_dims, n_actions)
    prep = prepare_q_params(params)          # hoisted: do once, reuse per step

    q_val = q_forward(state, action, prep)
    q_val = jax.block_until_ready(q_val)

    # Sanity check against a pure-JAX f32 reference of the same math
    # (kernel uses bf16 matmul operands -> loose tolerance).
    x = jnp.concatenate([state, action], axis=1)
    w1, b1, w2, b2, w3, b3 = params
    h = jnp.maximum(x @ w1 + b1, 0.0)
    h = jnp.maximum(h @ w2 + b2, 0.0)
    ref = h @ w3 + b3
    assert q_val.shape == (batch, 1)
    assert jnp.allclose(q_val, ref, atol=3e-2, rtol=3e-2), (
        jnp.max(jnp.abs(q_val - ref)))

    print("KERNEL_OK")
</pallas_src>

<mosaic_0001>
module attributes {stable_mosaic.version = 11 : i64} {
  func.func @q_mlp_kernel(%arg0: i32, %arg1: memref<16x128xbf16, #tpu.memory_space<vmem>>, %arg2: memref<256x16xbf16, #tpu.memory_space<vmem>>, %arg3: memref<256x1xf32, #tpu.memory_space<vmem>>, %arg4: memref<256x256xbf16, #tpu.memory_space<vmem>>, %arg5: memref<256x1xf32, #tpu.memory_space<vmem>>, %arg6: memref<256x1xf32, #tpu.memory_space<vmem>>, %arg7: memref<1x1xf32, #tpu.memory_space<vmem>>, %arg8: memref<1x128xf32, #tpu.memory_space<vmem>>) attributes {dimension_semantics = [#tpu.dimension_semantics<parallel>], iteration_bounds = array<i64: 1>, scalar_prefetch = 0 : i64, scratch_operands = 0 : i64, tpu.core_type = #tpu.core_type<tc>, window_params = [{transform_indices = @transform_0, window_bounds = array<i64: 16, 128>}, {pipeline_mode = #tpu.pipeline_mode<synchronous>, transform_indices = @transform_1, window_bounds = array<i64: 256, 16>}, {pipeline_mode = #tpu.pipeline_mode<synchronous>, transform_indices = @transform_2, window_bounds = array<i64: 256, 1>}, {pipeline_mode = #tpu.pipeline_mode<synchronous>, transform_indices = @transform_3, window_bounds = array<i64: 256, 256>}, {pipeline_mode = #tpu.pipeline_mode<synchronous>, transform_indices = @transform_4, window_bounds = array<i64: 256, 1>}, {pipeline_mode = #tpu.pipeline_mode<synchronous>, transform_indices = @transform_5, window_bounds = array<i64: 256, 1>}, {pipeline_mode = #tpu.pipeline_mode<synchronous>, transform_indices = @transform_6, window_bounds = array<i64: 1, 1>}, {transform_indices = @transform_7, window_bounds = array<i64: 1, 128>}]} {
    %c0 = arith.constant 0 : index
    %c0_0 = arith.constant 0 : index
    %0 = vector.load %arg2[%c0, %c0_0] : memref<256x16xbf16, #tpu.memory_space<vmem>>, vector<256x16xbf16>
    %c0_1 = arith.constant 0 : index
    %c0_2 = arith.constant 0 : index
    %1 = vector.load %arg1[%c0_1, %c0_2] : memref<16x128xbf16, #tpu.memory_space<vmem>>, vector<16x128xbf16>
    %cst = arith.constant dense<0.000000e+00> : vector<256x128xf32>
    %2 = tpu.matmul %0, %1, %cst {dimension_numbers = #tpu.dot_dimension_numbers<[1], [0], [0], [1], [0, 0, 1, 1], [], []>} : vector<256x16xbf16>, vector<16x128xbf16>, vector<256x128xf32> -> vector<256x128xf32>
    %c0_3 = arith.constant 0 : index
    %c0_4 = arith.constant 0 : index
    %3 = vector.load %arg3[%c0_3, %c0_4] : memref<256x1xf32, #tpu.memory_space<vmem>>, vector<256x1xf32>
    %4 = vector.broadcast %3 : vector<256x1xf32> to vector<256x128xf32>
    %5 = arith.addf %2, %4 : vector<256x128xf32>
    %cst_5 = arith.constant 0.000000e+00 : f32
    %6 = vector.broadcast %cst_5 : f32 to vector<256x128xf32>
    %7 = arith.maximumf %5, %6 : vector<256x128xf32>
    %c0_6 = arith.constant 0 : index
    %c0_7 = arith.constant 0 : index
    %8 = vector.load %arg4[%c0_6, %c0_7] : memref<256x256xbf16, #tpu.memory_space<vmem>>, vector<256x256xbf16>
    %9 = arith.truncf %7 : vector<256x128xf32> to vector<256x128xbf16>
    %cst_8 = arith.constant dense<0.000000e+00> : vector<256x128xf32>
    %10 = tpu.matmul %8, %9, %cst_8 {dimension_numbers = #tpu.dot_dimension_numbers<[1], [0], [0], [1], [0, 0, 1, 1], [], []>} : vector<256x256xbf16>, vector<256x128xbf16>, vector<256x128xf32> -> vector<256x128xf32>
    %c0_9 = arith.constant 0 : index
    %c0_10 = arith.constant 0 : index
    %11 = vector.load %arg5[%c0_9, %c0_10] : memref<256x1xf32, #tpu.memory_space<vmem>>, vector<256x1xf32>
    %12 = vector.broadcast %11 : vector<256x1xf32> to vector<256x128xf32>
    %13 = arith.addf %10, %12 : vector<256x128xf32>
    %cst_11 = arith.constant 0.000000e+00 : f32
    %14 = vector.broadcast %cst_11 : f32 to vector<256x128xf32>
    %15 = arith.maximumf %13, %14 : vector<256x128xf32>
    %c0_12 = arith.constant 0 : index
    %c0_13 = arith.constant 0 : index
    %16 = vector.load %arg6[%c0_12, %c0_13] : memref<256x1xf32, #tpu.memory_space<vmem>>, vector<256x1xf32>
    %17 = vector.broadcast %16 : vector<256x1xf32> to vector<256x128xf32>
    %18 = arith.mulf %15, %17 : vector<256x128xf32>
    %cst_14 = arith.constant dense<0.000000e+00> : vector<128xf32>
    %19 = vector.multi_reduction <add>, %18, %cst_14 [0] : vector<256x128xf32> to vector<128xf32>
    %20 = vector.shape_cast %19 : vector<128xf32> to vector<1x128xf32>
    %c0_15 = arith.constant 0 : index
    %c0_16 = arith.constant 0 : index
    %21 = vector.load %arg7[%c0_15, %c0_16] : memref<1x1xf32, #tpu.memory_space<vmem>>, vector<1x1xf32>
    %22 = vector.broadcast %21 : vector<1x1xf32> to vector<1x128xf32>
    %23 = arith.addf %20, %22 : vector<1x128xf32>
    %c0_17 = arith.constant 0 : index
    %c0_18 = arith.constant 0 : index
    %24 = vector.load %arg8[%c0_17, %c0_18] : memref<1x128xf32, #tpu.memory_space<vmem>>, vector<1x128xf32>
    tpu.vector_store %arg8[%c0_17, %c0_18], %23 {strides = array<i32>} : memref<1x128xf32, #tpu.memory_space<vmem>>, vector<1x128xf32>,
    return
  }
  func.func @transform_0(%arg0: i32) -> (i32, i32) {
    %c0_i32 = arith.constant 0 : i32
    %c0_i32_0 = arith.constant 0 : i32
    return %c0_i32, %arg0 : i32, i32
  }
  func.func @transform_1(%arg0: i32) -> (i32, i32) {
    %c0_i32 = arith.constant 0 : i32
    %c0_i32_0 = arith.constant 0 : i32
    %c0_i32_1 = arith.constant 0 : i32
    return %c0_i32, %c0_i32_0 : i32, i32
  }
  func.func @transform_2(%arg0: i32) -> (i32, i32) {
    %c0_i32 = arith.constant 0 : i32
    %c0_i32_0 = arith.constant 0 : i32
    %c0_i32_1 = arith.constant 0 : i32
    return %c0_i32, %c0_i32_0 : i32, i32
  }
  func.func @transform_3(%arg0: i32) -> (i32, i32) {
    %c0_i32 = arith.constant 0 : i32
    %c0_i32_0 = arith.constant 0 : i32
    %c0_i32_1 = arith.constant 0 : i32
    return %c0_i32, %c0_i32_0 : i32, i32
  }
  func.func @transform_4(%arg0: i32) -> (i32, i32) {
    %c0_i32 = arith.constant 0 : i32
    %c0_i32_0 = arith.constant 0 : i32
    %c0_i32_1 = arith.constant 0 : i32
    return %c0_i32, %c0_i32_0 : i32, i32
  }
  func.func @transform_5(%arg0: i32) -> (i32, i32) {
    %c0_i32 = arith.constant 0 : i32
    %c0_i32_0 = arith.constant 0 : i32
    %c0_i32_1 = arith.constant 0 : i32
    return %c0_i32, %c0_i32_0 : i32, i32
  }
  func.func @transform_6(%arg0: i32) -> (i32, i32) {
    %c0_i32 = arith.constant 0 : i32
    %c0_i32_0 = arith.constant 0 : i32
    %c0_i32_1 = arith.constant 0 : i32
    return %c0_i32, %c0_i32_0 : i32, i32
  }
  func.func @transform_7(%arg0: i32) -> (i32, i32) {
    %c0_i32 = arith.constant 0 : i32
    %c0_i32_0 = arith.constant 0 : i32
    return %c0_i32, %arg0 : i32, i32
  }
}

</mosaic_0001>

<llo_original>
// kernel: tpu_custom_call.1
$region0: #{tpu_custom_call.1}
  #allocation0 [shape = 'u32[]', space=smem, size = 0x4, offset = 0x4, fixed_abs, tag = 'smem constant byte address 0x4 - core index']
  #allocation1 [shape = 'u32[144,128]{1,0:T(1,128)}', space=vmem, size = 0x12000, scoped, tag = 'internal scratch']
  #allocation2 [shape = 'f32[1,1]{1,0:T(1,128)S(1)}', space=vmem, size = 0x200, scoped, tag = 'scoped memory for tpu_custom_call.1']
  %s0 = inlined_call_operand.vmem [shape: bf16[16,128], index: 0, kind: input, shape index: {}]
  %s1 = inlined_call_operand.vmem [shape: bf16[256,16], index: 1, kind: input, shape index: {}]
  %s2 = inlined_call_operand.vmem [shape: f32[256,1], index: 2, kind: input, shape index: {}]
  %s3 = inlined_call_operand.vmem [shape: bf16[256,256], index: 3, kind: input, shape index: {}]
  %s4 = inlined_call_operand.vmem [shape: f32[256,1], index: 4, kind: input, shape index: {}]
  %s5 = inlined_call_operand.vmem [shape: f32[256,1], index: 5, kind: input, shape index: {}]
  %s6 = inlined_call_operand.<no memory space> [shape: f32[1,1], index: 6, kind: input, shape index: {}]
  %s7 = inlined_call_operand.hbm [shape: f32[1,128], index: 7, kind: output, shape index: {}]
  %s8 = sld [smem:[#allocation0]]
  $region38: #{tpu_custom_call.1} parent=0
    _
  %s10 = ssub.s32 1, %s8
  %s11 = scalar_select 0, %s10, %s8
  %v12 = vstv %s6
  %13 = vst [vmem:[#allocation2] sm:$0x1] %v12
  $region1: #{tpu_custom_call.1} parent=0
    #allocation3 [shape = 'u8[512]{0}', space=vmem, size = 0x400, scoped, tag = 'output window, operand 0, single buffered']
    #allocation4 [shape = 's32[1]{0}', space=sflag, size = 0x4, scoped, tag = 'scoped memory for tpu_custom_call.1']
    %14 = vsyncpa [#allocation4], 0
    // Predicated region
    $region2: #{tpu_custom_call.1} parent=1 // pred_check
      _
    $region3: #{tpu_custom_call.1} parent=1 // pred_check_branch
      %16 = sbr.rel (0) target = $region5
    $region4: #{tpu_custom_call.1} parent=1 // pred_region
      _
    $region5: #{tpu_custom_call.1} parent=1 // pred_fallthru
      _
    // Predicated region
    $region6: #{tpu_custom_call.1} parent=1 // pred_check
      _
    $region7: #{tpu_custom_call.1} parent=1 // pred_check_branch
      %18 = sbr.rel (0) target = $region9
    $region8: #{tpu_custom_call.1} parent=1 // pred_region
      _
    $region9: #{tpu_custom_call.1} parent=1 // pred_fallthru
      _
    // Predicated region
    $region10: #{tpu_custom_call.1} parent=1 // pred_check
      _
    $region11: #{tpu_custom_call.1} parent=1 // pred_check_branch
      %20 = sbr.rel (0) target = $region13
    $region12: #{tpu_custom_call.1} parent=1 // pred_region
      _
    $region13: #{tpu_custom_call.1} parent=1 // pred_fallthru
      _
    // Predicated region
    $region14: #{tpu_custom_call.1} parent=1 // pred_check
      _
    $region15: #{tpu_custom_call.1} parent=1 // pred_check_branch
      %22 = sbr.rel (0) target = $region17
    $region16: #{tpu_custom_call.1} parent=1 // pred_region
      _
    $region17: #{tpu_custom_call.1} parent=1 // pred_fallthru
      _
    // Predicated region
    $region18: #{tpu_custom_call.1} parent=1 // pred_check
      _
    $region19: #{tpu_custom_call.1} parent=1 // pred_check_branch
      %24 = sbr.rel (0) target = $region21
    $region20: #{tpu_custom_call.1} parent=1 // pred_region
      _
    $region21: #{tpu_custom_call.1} parent=1 // pred_fallthru
      _
    // Predicated region
    $region22: #{tpu_custom_call.1} parent=1 // pred_check
      _
    $region23: #{tpu_custom_call.1} parent=1 // pred_check_branch
      %26 = sbr.rel (0) target = $region25
    $region24: #{tpu_custom_call.1} parent=1 // pred_region
      _
    $region25: #{tpu_custom_call.1} parent=1 // pred_fallthru
      _
    // Predicated region
    $region26: #{tpu_custom_call.1} parent=1 // pred_check
      _
    $region27: #{tpu_custom_call.1} parent=1 // pred_check_branch
      %28 = sbr.rel (0) target = $region29
    $region28: #{tpu_custom_call.1} parent=1 // pred_region
      _
    $region29: #{tpu_custom_call.1} parent=1 // pred_fallthru
      _
    %v30 = vld [vmem:[%s1] sm:$0xf]
    %v31 = vld [vmem:[%s1 + $0x4] sm:$0xf]
    %v32 = vld [vmem:[%s1 + $0x8] sm:$0xf]
    %v33 = vld [vmem:[%s1 + $0xc] sm:$0xf]
    %v34 = vld [vmem:[%s1 + $0x10] sm:$0xf]
    %v35 = vld [vmem:[%s1 + $0x14] sm:$0xf]
    %v36 = vld [vmem:[%s1 + $0x18] sm:$0xf]
    %v37 = vld [vmem:[%s1 + $0x1c] sm:$0xf]
    %v38 = vld [vmem:[%s1 + $0x20] sm:$0xf]
    %v39 = vld [vmem:[%s1 + $0x24] sm:$0xf]
    %v40 = vld [vmem:[%s1 + $0x28] sm:$0xf]
    %v41 = vld [vmem:[%s1 + $0x2c] sm:$0xf]
    %v42 = vld [vmem:[%s1 + $0x30] sm:$0xf]
    %v43 = vld [vmem:[%s1 + $0x34] sm:$0xf]
    %v44 = vld [vmem:[%s1 + $0x38] sm:$0xf]
    %v45 = vld [vmem:[%s1 + $0x3c] sm:$0xf]
    %v46 = vld [vmem:[%s1 + $0x40] sm:$0xf]
    %v47 = vld [vmem:[%s1 + $0x44] sm:$0xf]
    %v48 = vld [vmem:[%s1 + $0x48] sm:$0xf]
    %v49 = vld [vmem:[%s1 + $0x4c] sm:$0xf]
    %v50 = vld [vmem:[%s1 + $0x50] sm:$0xf]
    %v51 = vld [vmem:[%s1 + $0x54] sm:$0xf]
    %v52 = vld [vmem:[%s1 + $0x58] sm:$0xf]
    %v53 = vld [vmem:[%s1 + $0x5c] sm:$0xf]
    %v54 = vld [vmem:[%s1 + $0x60] sm:$0xf]
    %v55 = vld [vmem:[%s1 + $0x64] sm:$0xf]
    %v56 = vld [vmem:[%s1 + $0x68] sm:$0xf]
    %v57 = vld [vmem:[%s1 + $0x6c] sm:$0xf]
    %v58 = vld [vmem:[%s1 + $0x70] sm:$0xf]
    %v59 = vld [vmem:[%s1 + $0x74] sm:$0xf]
    %v60 = vld [vmem:[%s1 + $0x78] sm:$0xf]
    %v61 = vld [vmem:[%s1 + $0x7c] sm:$0xf]
    %v62 = vld [vmem:[%s0] sm:$0xf]
    %v63 = vld [vmem:[%s0 + $0x4] sm:$0xf]
    %v64 = vld [vmem:[%s2] sm:$0xff]
    %v65 = vld [vmem:[%s2 + $0x8] sm:$0xff]
    %v66 = vld [vmem:[%s2 + $0x10] sm:$0xff]
    %v67 = vld [vmem:[%s2 + $0x18] sm:$0xff]
    %v68 = vld [vmem:[%s2 + $0x20] sm:$0xff]
    %v69 = vld [vmem:[%s2 + $0x28] sm:$0xff]
    %v70 = vld [vmem:[%s2 + $0x30] sm:$0xff]
    %v71 = vld [vmem:[%s2 + $0x38] sm:$0xff]
    %v72 = vld [vmem:[%s2 + $0x40] sm:$0xff]
    %v73 = vld [vmem:[%s2 + $0x48] sm:$0xff]
    %v74 = vld [vmem:[%s2 + $0x50] sm:$0xff]
    %v75 = vld [vmem:[%s2 + $0x58] sm:$0xff]
    %v76 = vld [vmem:[%s2 + $0x60] sm:$0xff]
    %v77 = vld [vmem:[%s2 + $0x68] sm:$0xff]
    %v78 = vld [vmem:[%s2 + $0x70] sm:$0xff]
    %v79 = vld [vmem:[%s2 + $0x78] sm:$0xff]
    %v80 = vld [vmem:[%s2 + $0x80] sm:$0xff]
    %v81 = vld [vmem:[%s2 + $0x88] sm:$0xff]
    %v82 = vld [vmem:[%s2 + $0x90] sm:$0xff]
    %v83 = vld [vmem:[%s2 + $0x98] sm:$0xff]
    %v84 = vld [vmem:[%s2 + $0xa0] sm:$0xff]
    %v85 = vld [vmem:[%s2 + $0xa8] sm:$0xff]
    %v86 = vld [vmem:[%s2 + $0xb0] sm:$0xff]
    %v87 = vld [vmem:[%s2 + $0xb8] sm:$0xff]
    %v88 = vld [vmem:[%s2 + $0xc0] sm:$0xff]
    %v89 = vld [vmem:[%s2 + $0xc8] sm:$0xff]
    %v90 = vld [vmem:[%s2 + $0xd0] sm:$0xff]
    %v91 = vld [vmem:[%s2 + $0xd8] sm:$0xff]
    %v92 = vld [vmem:[%s2 + $0xe0] sm:$0xff]
    %v93 = vld [vmem:[%s2 + $0xe8] sm:$0xff]
    %v94 = vld [vmem:[%s2 + $0xf0] sm:$0xff]
    %v95 = vld [vmem:[%s2 + $0xf8] sm:$0xff]
    %97 = vset.pattern.permute.xlu0 0
    %98 = vperm.xlu0 %97, %v64
    %v99 = vpop.permute.xlu0 %98
    %102 = vset.pattern.permute.xlu0 0
    %103 = vperm.xlu0 %102, %v65
    %v104 = vpop.permute.xlu0 %103
    %107 = vset.pattern.permute.xlu0 0
    %108 = vperm.xlu0 %107, %v66
    %v109 = vpop.permute.xlu0 %108
    %112 = vset.pattern.permute.xlu0 0
    %113 = vperm.xlu0 %112, %v67
    %v114 = vpop.permute.xlu0 %113
    %117 = vset.pattern.permute.xlu0 0
    %118 = vperm.xlu0 %117, %v68
    %v119 = vpop.permute.xlu0 %118
    %122 = vset.pattern.permute.xlu0 0
    %123 = vperm.xlu0 %122, %v69
    %v124 = vpop.permute.xlu0 %123
    %127 = vset.pattern.permute.xlu0 0
    %128 = vperm.xlu0 %127, %v70
    %v129 = vpop.permute.xlu0 %128
    %132 = vset.pattern.permute.xlu0 0
    %133 = vperm.xlu0 %132, %v71
    %v134 = vpop.permute.xlu0 %133
    %137 = vset.pattern.permute.xlu0 0
    %138 = vperm.xlu0 %137, %v72
    %v139 = vpop.permute.xlu0 %138
    %142 = vset.pattern.permute.xlu0 0
    %143 = vperm.xlu0 %142, %v73
    %v144 = vpop.permute.xlu0 %143
    %147 = vset.pattern.permute.xlu0 0
    %148 = vperm.xlu0 %147, %v74
    %v149 = vpop.permute.xlu0 %148
    %152 = vset.pattern.permute.xlu0 0
    %153 = vperm.xlu0 %152, %v75
    %v154 = vpop.permute.xlu0 %153
    %157 = vset.pattern.permute.xlu0 0
    %158 = vperm.xlu0 %157, %v76
    %v159 = vpop.permute.xlu0 %158
    %162 = vset.pattern.permute.xlu0 0
    %163 = vperm.xlu0 %162, %v77
    %v164 = vpop.permute.xlu0 %163
    %167 = vset.pattern.permute.xlu0 0
    %168 = vperm.xlu0 %167, %v78
    %v169 = vpop.permute.xlu0 %168
    %172 = vset.pattern.permute.xlu0 0
    %173 = vperm.xlu0 %172, %v79
    %v174 = vpop.permute.xlu0 %173
    %177 = vset.pattern.permute.xlu0 0
    %178 = vperm.xlu0 %177, %v80
    %v179 = vpop.permute.xlu0 %178
    %182 = vset.pattern.permute.xlu0 0
    %183 = vperm.xlu0 %182, %v81
    %v184 = vpop.permute.xlu0 %183
    %187 = vset.pattern.permute.xlu0 0
    %188 = vperm.xlu0 %187, %v82
    %v189 = vpop.permute.xlu0 %188
    %192 = vset.pattern.permute.xlu0 0
    %193 = vperm.xlu0 %192, %v83
    %v194 = vpop.permute.xlu0 %193
    %197 = vset.pattern.permute.xlu0 0
    %198 = vperm.xlu0 %197, %v84
    %v199 = vpop.permute.xlu0 %198
    %202 = vset.pattern.permute.xlu0 0
    %203 = vperm.xlu0 %202, %v85
    %v204 = vpop.permute.xlu0 %203
    %207 = vset.pattern.permute.xlu0 0
    %208 = vperm.xlu0 %207, %v86
    %v209 = vpop.permute.xlu0 %208
    %212 = vset.pattern.permute.xlu0 0
    %213 = vperm.xlu0 %212, %v87
    %v214 = vpop.permute.xlu0 %213
    %217 = vset.pattern.permute.xlu0 0
    %218 = vperm.xlu0 %217, %v88
    %v219 = vpop.permute.xlu0 %218
    %222 = vset.pattern.permute.xlu0 0
    %223 = vperm.xlu0 %222, %v89
    %v224 = vpop.permute.xlu0 %223
    %227 = vset.pattern.permute.xlu0 0
    %228 = vperm.xlu0 %227, %v90
    %v229 = vpop.permute.xlu0 %228
    %232 = vset.pattern.permute.xlu0 0
    %233 = vperm.xlu0 %232, %v91
    %v234 = vpop.permute.xlu0 %233
    %237 = vset.pattern.permute.xlu0 0
    %238 = vperm.xlu0 %237, %v92
    %v239 = vpop.permute.xlu0 %238
    %242 = vset.pattern.permute.xlu0 0
    %243 = vperm.xlu0 %242, %v93
    %v244 = vpop.permute.xlu0 %243
    %247 = vset.pattern.permute.xlu0 0
    %248 = vperm.xlu0 %247, %v94
    %v249 = vpop.permute.xlu0 %248
    %252 = vset.pattern.permute.xlu0 0
    %253 = vperm.xlu0 %252, %v95
    %v254 = vpop.permute.xlu0 %253
    %v288 = vunpack.c.l.b16 %v30
    %v289 = vunpack.c.l.b16 %v31
    %v290 = vunpack.c.l.b16 %v32
    %v291 = vunpack.c.l.b16 %v33
    %v292 = vunpack.c.l.b16 %v34
    %v293 = vunpack.c.l.b16 %v35
    %v294 = vunpack.c.l.b16 %v36
    %v295 = vunpack.c.l.b16 %v37
    %v296 = vunpack.c.l.b16 %v38
    %v297 = vunpack.c.l.b16 %v39
    %v298 = vunpack.c.l.b16 %v40
    %v299 = vunpack.c.l.b16 %v41
    %v300 = vunpack.c.l.b16 %v42
    %v301 = vunpack.c.l.b16 %v43
    %v302 = vunpack.c.l.b16 %v44
    %v303 = vunpack.c.l.b16 %v45
    %v304 = vunpack.c.l.b16 %v46
    %v305 = vunpack.c.l.b16 %v47
    %v306 = vunpack.c.l.b16 %v48
    %v307 = vunpack.c.l.b16 %v49
    %v308 = vunpack.c.l.b16 %v50
    %v309 = vunpack.c.l.b16 %v51
    %v310 = vunpack.c.l.b16 %v52
    %v311 = vunpack.c.l.b16 %v53
    %v312 = vunpack.c.l.b16 %v54
    %v313 = vunpack.c.l.b16 %v55
    %v314 = vunpack.c.l.b16 %v56
    %v315 = vunpack.c.l.b16 %v57
    %v316 = vunpack.c.l.b16 %v58
    %v317 = vunpack.c.l.b16 %v59
    %v318 = vunpack.c.l.b16 %v60
    %v319 = vunpack.c.l.b16 %v61
    %v320 = vpack.c.b16 %v289, %v288
    %v321 = vpack.c.b16 %v291, %v290
    %v322 = vpack.c.b16 %v293, %v292
    %v323 = vpack.c.b16 %v295, %v294
    %v324 = vpack.c.b16 %v297, %v296
    %v325 = vpack.c.b16 %v299, %v298
    %v326 = vpack.c.b16 %v301, %v300
    %v327 = vpack.c.b16 %v303, %v302
    %v328 = vpack.c.b16 %v305, %v304
    %v329 = vpack.c.b16 %v307, %v306
    %v330 = vpack.c.b16 %v309, %v308
    %v331 = vpack.c.b16 %v311, %v310
    %v332 = vpack.c.b16 %v313, %v312
    %v333 = vpack.c.b16 %v315, %v314
    %v334 = vpack.c.b16 %v317, %v316
    %v335 = vpack.c.b16 %v319, %v318
    %v338 = vunpack.c.l.b16 %v62
    %v339 = vunpack.c.l.b16 %v63
    %v340 = vpack.c.b16 %v339, %v338
    %vm342 = vcmask 130048
    %v344 = vsel %vm342, %v320, 0
    %v347 = vsel %vm342, %v321, 0
    %v350 = vsel %vm342, %v322, 0
    %v353 = vsel %vm342, %v323, 0
    %v356 = vsel %vm342, %v324, 0
    %v359 = vsel %vm342, %v325, 0
    %v362 = vsel %vm342, %v326, 0
    %v365 = vsel %vm342, %v327, 0
    %v368 = vsel %vm342, %v328, 0
    %v371 = vsel %vm342, %v329, 0
    %v374 = vsel %vm342, %v330, 0
    %v377 = vsel %vm342, %v331, 0
    %v380 = vsel %vm342, %v332, 0
    %v383 = vsel %vm342, %v333, 0
    %v386 = vsel %vm342, %v334, 0
    %v389 = vsel %vm342, %v335, 0
    %391 = vmatprep.subr.bf16.mxu0 0
    %392 = vmatpush1.bf16.msra.mxu0 %v340
    %393 = vmatprep.subr.bf16.mxu0 0
    %394 = vmatpush1.bf16.msra.mxu0 0
    %395 = vmatprep.subr.bf16.mxu0 0
    %396 = vmatpush1.bf16.msra.mxu0 0
    %397 = vmatprep.subr.bf16.mxu0 0
    %398 = vmatpush1.bf16.msra.mxu0 0
    %399 = vmatprep.subr.bf16.mxu0 0
    %400 = vmatpush1.bf16.msra.mxu0 0
    %401 = vmatprep.subr.bf16.mxu0 0
    %402 = vmatpush1.bf16.msra.mxu0 0
    %403 = vmatprep.subr.bf16.mxu0 0
    %404 = vmatpush1.bf16.msra.mxu0 0
    %405 = vmatprep.subr.bf16.mxu0 0
    %406 = vmatpush1.bf16.msra.mxu0 0
    %407 = vmatprep.subr.bf16.mxu0 0
    %408 = vmatpush1.bf16.msra.mxu0 0
    %409 = vmatprep.subr.bf16.mxu0 0
    %410 = vmatpush1.bf16.msra.mxu0 0
    %411 = vmatprep.subr.bf16.mxu0 0
    %412 = vmatpush1.bf16.msra.mxu0 0
    %413 = vmatprep.subr.bf16.mxu0 0
    %414 = vmatpush1.bf16.msra.mxu0 0
    %415 = vmatprep.subr.bf16.mxu0 0
    %416 = vmatpush1.bf16.msra.mxu0 0
    %417 = vmatprep.subr.bf16.mxu0 0
    %418 = vmatpush1.bf16.msra.mxu0 0
    %419 = vmatprep.subr.bf16.mxu0 0
    %420 = vmatpush1.bf16.msra.mxu0 0
    %421 = vmatprep.subr.bf16.mxu0 0
    %422 = vmatpush1.bf16.msra.mxu0 0
    %423 = vmatprep.mubr.bf16.mxu0 0
    %424 = vmatmul.mubr.bf16.gmra.mrb[0].mxu0 %v344
    %v425 = vpop.f32.mrb[0].mxu0
    %v426 = vadd.f32 %v99, %v425
    %v427 = vpop.f32.mrb[0].mxu0
    %v428 = vpop.f32.mrb[0].mxu0
    %v429 = vadd.f32 %v104, %v428
    %v430 = vpop.f32.mrb[0].mxu0
    %431 = vmatprep.mubr.bf16.mxu0 0
    %432 = vmatmul.mubr.bf16.gmra.mrb[0].mxu0 %v347
    %v433 = vpop.f32.mrb[0].mxu0
    %v434 = vadd.f32 %v109, %v433
    %v435 = vpop.f32.mrb[0].mxu0
    %v436 = vpop.f32.mrb[0].mxu0
    %v437 = vadd.f32 %v114, %v436
    %v438 = vpop.f32.mrb[0].mxu0
    %439 = vmatprep.mubr.bf16.mxu0 0
    %440 = vmatmul.mubr.bf16.gmra.mrb[0].mxu0 %v350
    %v441 = vpop.f32.mrb[0].mxu0
    %v442 = vadd.f32 %v119, %v441
    %v443 = vpop.f32.mrb[0].mxu0
    %v444 = vpop.f32.mrb[0].mxu0
    %v445 = vadd.f32 %v124, %v444
    %v446 = vpop.f32.mrb[0].mxu0
    %447 = vmatprep.mubr.bf16.mxu0 0
    %448 = vmatmul.mubr.bf16.gmra.mrb[0].mxu0 %v353
    %v449 = vpop.f32.mrb[0].mxu0
    %v450 = vadd.f32 %v129, %v449
    %v451 = vpop.f32.mrb[0].mxu0
    %v452 = vpop.f32.mrb[0].mxu0
    %v453 = vadd.f32 %v134, %v452
    %v454 = vpop.f32.mrb[0].mxu0
    %455 = vmatprep.mubr.bf16.mxu0 0
    %456 = vmatmul.mubr.bf16.gmra.mrb[0].mxu0 %v356
    %v457 = vpop.f32.mrb[0].mxu0
    %v458 = vadd.f32 %v139, %v457
    %v459 = vpop.f32.mrb[0].mxu0
    %v460 = vpop.f32.mrb[0].mxu0
    %v461 = vadd.f32 %v144, %v460
    %v462 = vpop.f32.mrb[0].mxu0
    %463 = vmatprep.mubr.bf16.mxu0 0
    %464 = vmatmul.mubr.bf16.gmra.mrb[0].mxu0 %v359
    %v465 = vpop.f32.mrb[0].mxu0
    %v466 = vadd.f32 %v149, %v465
    %v467 = vpop.f32.mrb[0].mxu0
    %v468 = vpop.f32.mrb[0].mxu0
    %v469 = vadd.f32 %v154, %v468
    %v470 = vpop.f32.mrb[0].mxu0
    %471 = vmatprep.mubr.bf16.mxu0 0
    %472 = vmatmul.mubr.bf16.gmra.mrb[0].mxu0 %v362
    %v473 = vpop.f32.mrb[0].mxu0
    %v474 = vadd.f32 %v159, %v473
    %v475 = vpop.f32.mrb[0].mxu0
    %v476 = vpop.f32.mrb[0].mxu0
    %v477 = vadd.f32 %v164, %v476
    %v478 = vpop.f32.mrb[0].mxu0
    %479 = vmatprep.mubr.bf16.mxu0 0
    %480 = vmatmul.mubr.bf16.gmra.mrb[0].mxu0 %v365
    %v481 = vpop.f32.mrb[0].mxu0
    %v482 = vadd.f32 %v169, %v481
    %v483 = vpop.f32.mrb[0].mxu0
    %v484 = vpop.f32.mrb[0].mxu0
    %v485 = vadd.f32 %v174, %v484
    %v486 = vpop.f32.mrb[0].mxu0
    %487 = vmatprep.mubr.bf16.mxu0 0
    %488 = vmatmul.mubr.bf16.gmra.mrb[0].mxu0 %v368
    %v489 = vpop.f32.mrb[0].mxu0
    %v490 = vadd.f32 %v179, %v489
    %v491 = vpop.f32.mrb[0].mxu0
    %v492 = vpop.f32.mrb[0].mxu0
    %v493 = vadd.f32 %v184, %v492
    %v494 = vpop.f32.mrb[0].mxu0
    %495 = vmatprep.mubr.bf16.mxu0 0
    %496 = vmatmul.mubr.bf16.gmra.mrb[0].mxu0 %v371
    %v497 = vpop.f32.mrb[0].mxu0
    %v498 = vadd.f32 %v189, %v497
    %v499 = vpop.f32.mrb[0].mxu0
    %v500 = vpop.f32.mrb[0].mxu0
    %v501 = vadd.f32 %v194, %v500
    %v502 = vpop.f32.mrb[0].mxu0
    %503 = vmatprep.mubr.bf16.mxu0 0
    %504 = vmatmul.mubr.bf16.gmra.mrb[0].mxu0 %v374
    %v505 = vpop.f32.mrb[0].mxu0
    %v506 = vadd.f32 %v199, %v505
    %v507 = vpop.f32.mrb[0].mxu0
    %v508 = vpop.f32.mrb[0].mxu0
    %v509 = vadd.f32 %v204, %v508
    %v510 = vpop.f32.mrb[0].mxu0
    %511 = vmatprep.mubr.bf16.mxu0 0
    %512 = vmatmul.mubr.bf16.gmra.mrb[0].mxu0 %v377
    %v513 = vpop.f32.mrb[0].mxu0
    %v514 = vadd.f32 %v209, %v513
    %v515 = vpop.f32.mrb[0].mxu0
    %v516 = vpop.f32.mrb[0].mxu0
    %v517 = vadd.f32 %v214, %v516
    %v518 = vpop.f32.mrb[0].mxu0
    %519 = vmatprep.mubr.bf16.mxu0 0
    %520 = vmatmul.mubr.bf16.gmra.mrb[0].mxu0 %v380
    %v521 = vpop.f32.mrb[0].mxu0
    %v522 = vadd.f32 %v219, %v521
    %v523 = vpop.f32.mrb[0].mxu0
    %v524 = vpop.f32.mrb[0].mxu0
    %v525 = vadd.f32 %v224, %v524
    %v526 = vpop.f32.mrb[0].mxu0
    %527 = vmatprep.mubr.bf16.mxu0 0
    %528 = vmatmul.mubr.bf16.gmra.mrb[0].mxu0 %v383
    %v529 = vpop.f32.mrb[0].mxu0
    %v530 = vadd.f32 %v229, %v529
    %v531 = vpop.f32.mrb[0].mxu0
    %v532 = vpop.f32.mrb[0].mxu0
    %v533 = vadd.f32 %v234, %v532
    %v534 = vpop.f32.mrb[0].mxu0
    %535 = vmatprep.mubr.bf16.mxu0 0
    %536 = vmatmul.mubr.bf16.gmra.mrb[0].mxu0 %v386
    %v537 = vpop.f32.mrb[0].mxu0
    %v538 = vadd.f32 %v239, %v537
    %v539 = vpop.f32.mrb[0].mxu0
    %v540 = vpop.f32.mrb[0].mxu0
    %v541 = vadd.f32 %v244, %v540
    %v542 = vpop.f32.mrb[0].mxu0
    %543 = vmatprep.mubr.bf16.mxu0 0
    %544 = vmatmul.mubr.bf16.gmra.mrb[0].mxu0 %v389
    %v545 = vpop.f32.mrb[0].mxu0
    %v546 = vadd.f32 %v249, %v545
    %v547 = vpop.f32.mrb[0].mxu0
    %v548 = vpop.f32.mrb[0].mxu0
    %v549 = vadd.f32 %v254, %v548
    %v550 = vpop.f32.mrb[0].mxu0
    %551 = vdwg.mxu0
    %v552 = vmax.f32 %v426, 0.0
    %v553 = vmax.f32 %v429, 0.0
    %v554 = vmax.f32 %v434, 0.0
    %v555 = vmax.f32 %v437, 0.0
    %v556 = vmax.f32 %v442, 0.0
    %v557 = vmax.f32 %v445, 0.0
    %v558 = vmax.f32 %v450, 0.0
    %v559 = vmax.f32 %v453, 0.0
    %v560 = vmax.f32 %v458, 0.0
    %v561 = vmax.f32 %v461, 0.0
    %v562 = vmax.f32 %v466, 0.0
    %v563 = vmax.f32 %v469, 0.0
    %v564 = vmax.f32 %v474, 0.0
    %v565 = vmax.f32 %v477, 0.0
    %v566 = vmax.f32 %v482, 0.0
    %v567 = vmax.f32 %v485, 0.0
    %v568 = vmax.f32 %v490, 0.0
    %v569 = vmax.f32 %v493, 0.0
    %v570 = vmax.f32 %v498, 0.0
    %v571 = vmax.f32 %v501, 0.0
    %v572 = vmax.f32 %v506, 0.0
    %v573 = vmax.f32 %v509, 0.0
    %v574 = vmax.f32 %v514, 0.0
    %v575 = vmax.f32 %v517, 0.0
    %v576 = vmax.f32 %v522, 0.0
    %v577 = vmax.f32 %v525, 0.0
    %v578 = vmax.f32 %v530, 0.0
    %v579 = vmax.f32 %v533, 0.0
    %v580 = vmax.f32 %v538, 0.0
    %v581 = vmax.f32 %v541, 0.0
    %v582 = vmax.f32 %v546, 0.0
    %v583 = vmax.f32 %v549, 0.0
    %v584 = vld [vmem:[%s3] sm:$0xff]
    %v585 = vld [vmem:[%s3 + $0x8] sm:$0xff]
    %v586 = vld [vmem:[%s3 + $0x10] sm:$0xff]
    %v587 = vld [vmem:[%s3 + $0x18] sm:$0xff]
    %v588 = vld [vmem:[%s3 + $0x20] sm:$0xff]
    %v589 = vld [vmem:[%s3 + $0x28] sm:$0xff]
    %v590 = vld [vmem:[%s3 + $0x30] sm:$0xff]
    %v591 = vld [vmem:[%s3 + $0x38] sm:$0xff]
    %v592 = vld [vmem:[%s3 + $0x40] sm:$0xff]
    %v593 = vld [vmem:[%s3 + $0x48] sm:$0xff]
    %v594 = vld [vmem:[%s3 + $0x50] sm:$0xff]
    %v595 = vld [vmem:[%s3 + $0x58] sm:$0xff]
    %v596 = vld [vmem:[%s3 + $0x60] sm:$0xff]
    %v597 = vld [vmem:[%s3 + $0x68] sm:$0xff]
    %v598 = vld [vmem:[%s3 + $0x70] sm:$0xff]
    %v599 = vld [vmem:[%s3 + $0x78] sm:$0xff]
    %v600 = vld [vmem:[%s3 + $0x80] sm:$0xff]
    %v601 = vld [vmem:[%s3 + $0x88] sm:$0xff]
    %v602 = vld [vmem:[%s3 + $0x90] sm:$0xff]
    %v603 = vld [vmem:[%s3 + $0x98] sm:$0xff]
    %v604 = vld [vmem:[%s3 + $0xa0] sm:$0xff]
    %v605 = vld [vmem:[%s3 + $0xa8] sm:$0xff]
    %v606 = vld [vmem:[%s3 + $0xb0] sm:$0xff]
    %v607 = vld [vmem:[%s3 + $0xb8] sm:$0xff]
    %v608 = vld [vmem:[%s3 + $0xc0] sm:$0xff]
    %v609 = vld [vmem:[%s3 + $0xc8] sm:$0xff]
    %v610 = vld [vmem:[%s3 + $0xd0] sm:$0xff]
    %v611 = vld [vmem:[%s3 + $0xd8] sm:$0xff]
    %v612 = vld [vmem:[%s3 + $0xe0] sm:$0xff]
    %v613 = vld [vmem:[%s3 + $0xe8] sm:$0xff]
    %v614 = vld [vmem:[%s3 + $0xf0] sm:$0xff]
    %v615 = vld [vmem:[%s3 + $0xf8] sm:$0xff]
    %v616 = vpack.c.bf16 %v553, %v552
    %v617 = vpack.c.bf16 %v555, %v554
    %v618 = vpack.c.bf16 %v557, %v556
    %v619 = vpack.c.bf16 %v559, %v558
    %v620 = vpack.c.bf16 %v561, %v560
    %v621 = vpack.c.bf16 %v563, %v562
    %v622 = vpack.c.bf16 %v565, %v564
    %v623 = vpack.c.bf16 %v567, %v566
    %v624 = vpack.c.bf16 %v569, %v568
    %v625 = vpack.c.bf16 %v571, %v570
    %v626 = vpack.c.bf16 %v573, %v572
    %v627 = vpack.c.bf16 %v575, %v574
    %v628 = vpack.c.bf16 %v577, %v576
    %v629 = vpack.c.bf16 %v579, %v578
    %v630 = vpack.c.bf16 %v581, %v580
    %v631 = vpack.c.bf16 %v583, %v582
    %v632 = vld [vmem:[%s4] sm:$0xff]
    %v633 = vld [vmem:[%s4 + $0x8] sm:$0xff]
    %v634 = vld [vmem:[%s4 + $0x10] sm:$0xff]
    %v635 = vld [vmem:[%s4 + $0x18] sm:$0xff]
    %v636 = vld [vmem:[%s4 + $0x20] sm:$0xff]
    %v637 = vld [vmem:[%s4 + $0x28] sm:$0xff]
    %v638 = vld [vmem:[%s4 + $0x30] sm:$0xff]
    %v639 = vld [vmem:[%s4 + $0x38] sm:$0xff]
    %v640 = vld [vmem:[%s4 + $0x40] sm:$0xff]
    %v641 = vld [vmem:[%s4 + $0x48] sm:$0xff]
    %v642 = vld [vmem:[%s4 + $0x50] sm:$0xff]
    %v643 = vld [vmem:[%s4 + $0x58] sm:$0xff]
    %v644 = vld [vmem:[%s4 + $0x60] sm:$0xff]
    %v645 = vld [vmem:[%s4 + $0x68] sm:$0xff]
    %v646 = vld [vmem:[%s4 + $0x70] sm:$0xff]
    %v647 = vld [vmem:[%s4 + $0x78] sm:$0xff]
    %v648 = vld [vmem:[%s4 + $0x80] sm:$0xff]
    %v649 = vld [vmem:[%s4 + $0x88] sm:$0xff]
    %v650 = vld [vmem:[%s4 + $0x90] sm:$0xff]
    %v651 = vld [vmem:[%s4 + $0x98] sm:$0xff]
    %v652 = vld [vmem:[%s4 + $0xa0] sm:$0xff]
    %v653 = vld [vmem:[%s4 + $0xa8] sm:$0xff]
    %v654 = vld [vmem:[%s4 + $0xb0] sm:$0xff]
    %v655 = vld [vmem:[%s4 + $0xb8] sm:$0xff]
    %v656 = vld [vmem:[%s4 + $0xc0] sm:$0xff]
    %v657 = vld [vmem:[%s4 + $0xc8] sm:$0xff]
    %v658 = vld [vmem:[%s4 + $0xd0] sm:$0xff]
    %v659 = vld [vmem:[%s4 + $0xd8] sm:$0xff]
    %v660 = vld [vmem:[%s4 + $0xe0] sm:$0xff]
    %v661 = vld [vmem:[%s4 + $0xe8] sm:$0xff]
    %v662 = vld [vmem:[%s4 + $0xf0] sm:$0xff]
    %v663 = vld [vmem:[%s4 + $0xf8] sm:$0xff]
    %665 = vset.pattern.permute.xlu0 0
    %666 = vperm.xlu0 %665, %v632
    %v667 = vpop.permute.xlu0 %666
    %670 = vset.pattern.permute.xlu0 0
    %671 = vperm.xlu0 %670, %v633
    %v672 = vpop.permute.xlu0 %671
    %675 = vset.pattern.permute.xlu0 0
    %676 = vperm.xlu0 %675, %v634
    %v677 = vpop.permute.xlu0 %676
    %680 = vset.pattern.permute.xlu0 0
    %681 = vperm.xlu0 %680, %v635
    %v682 = vpop.permute.xlu0 %681
    %685 = vset.pattern.permute.xlu0 0
    %686 = vperm.xlu0 %685, %v636
    %v687 = vpop.permute.xlu0 %686
    %690 = vset.pattern.permute.xlu0 0
    %691 = vperm.xlu0 %690, %v637
    %v692 = vpop.permute.xlu0 %691
    %695 = vset.pattern.permute.xlu0 0
    %696 = vperm.xlu0 %695, %v638
    %v697 = vpop.permute.xlu0 %696
    %700 = vset.pattern.permute.xlu0 0
    %701 = vperm.xlu0 %700, %v639
    %v702 = vpop.permute.xlu0 %701
    %705 = vset.pattern.permute.xlu0 0
    %706 = vperm.xlu0 %705, %v640
    %v707 = vpop.permute.xlu0 %706
    %710 = vset.pattern.permute.xlu0 0
    %711 = vperm.xlu0 %710, %v641
    %v712 = vpop.permute.xlu0 %711
    %715 = vset.pattern.permute.xlu0 0
    %716 = vperm.xlu0 %715, %v642
    %v717 = vpop.permute.xlu0 %716
    %720 = vset.pattern.permute.xlu0 0
    %721 = vperm.xlu0 %720, %v643
    %v722 = vpop.permute.xlu0 %721
    %725 = vset.pattern.permute.xlu0 0
    %726 = vperm.xlu0 %725, %v644
    %v727 = vpop.permute.xlu0 %726
    %730 = vset.pattern.permute.xlu0 0
    %731 = vperm.xlu0 %730, %v645
    %v732 = vpop.permute.xlu0 %731
    %735 = vset.pattern.permute.xlu0 0
    %736 = vperm.xlu0 %735, %v646
    %v737 = vpop.permute.xlu0 %736
    %740 = vset.pattern.permute.xlu0 0
    %741 = vperm.xlu0 %740, %v647
    %v742 = vpop.permute.xlu0 %741
    %745 = vset.pattern.permute.xlu0 0
    %746 = vperm.xlu0 %745, %v648
    %v747 = vpop.permute.xlu0 %746
    %750 = vset.pattern.permute.xlu0 0
    %751 = vperm.xlu0 %750, %v649
    %v752 = vpop.permute.xlu0 %751
    %755 = vset.pattern.permute.xlu0 0
    %756 = vperm.xlu0 %755, %v650
    %v757 = vpop.permute.xlu0 %756
    %760 = vset.pattern.permute.xlu0 0
    %761 = vperm.xlu0 %760, %v651
    %v762 = vpop.permute.xlu0 %761
    %765 = vset.pattern.permute.xlu0 0
    %766 = vperm.xlu0 %765, %v652
    %v767 = vpop.permute.xlu0 %766
    %770 = vset.pattern.permute.xlu0 0
    %771 = vperm.xlu0 %770, %v653
    %v772 = vpop.permute.xlu0 %771
    %775 = vset.pattern.permute.xlu0 0
    %776 = vperm.xlu0 %775, %v654
    %v777 = vpop.permute.xlu0 %776
    %780 = vset.pattern.permute.xlu0 0
    %781 = vperm.xlu0 %780, %v655
    %v782 = vpop.permute.xlu0 %781
    %785 = vset.pattern.permute.xlu0 0
    %786 = vperm.xlu0 %785, %v656
    %v787 = vpop.permute.xlu0 %786
    %790 = vset.pattern.permute.xlu0 0
    %791 = vperm.xlu0 %790, %v657
    %v792 = vpop.permute.xlu0 %791
    %795 = vset.pattern.permute.xlu0 0
    %796 = vperm.xlu0 %795, %v658
    %v797 = vpop.permute.xlu0 %796
    %800 = vset.pattern.permute.xlu0 0
    %801 = vperm.xlu0 %800, %v659
    %v802 = vpop.permute.xlu0 %801
    %805 = vset.pattern.permute.xlu0 0
    %806 = vperm.xlu0 %805, %v660
    %v807 = vpop.permute.xlu0 %806
    %810 = vset.pattern.permute.xlu0 0
    %811 = vperm.xlu0 %810, %v661
    %v812 = vpop.permute.xlu0 %811
    %815 = vset.pattern.permute.xlu0 0
    %816 = vperm.xlu0 %815, %v662
    %v817 = vpop.permute.xlu0 %816
    %820 = vset.pattern.permute.xlu0 0
    %821 = vperm.xlu0 %820, %v663
    %v822 = vpop.permute.xlu0 %821
    %v856 = vunpack.c.l.b16 %v584
    %v857 = vunpack.c.h.b16 %v584
    %v858 = vunpack.c.l.b16 %v585
    %v859 = vunpack.c.h.b16 %v585
    %v860 = vunpack.c.l.b16 %v586
    %v861 = vunpack.c.h.b16 %v586
    %v862 = vunpack.c.l.b16 %v587
    %v863 = vunpack.c.h.b16 %v587
    %v864 = vunpack.c.l.b16 %v588
    %v865 = vunpack.c.h.b16 %v588
    %v866 = vunpack.c.l.b16 %v589
    %v867 = vunpack.c.h.b16 %v589
    %v868 = vunpack.c.l.b16 %v590
    %v869 = vunpack.c.h.b16 %v590
    %v870 = vunpack.c.l.b16 %v591
    %v871 = vunpack.c.h.b16 %v591
    %v872 = vunpack.c.l.b16 %v592
    %v873 = vunpack.c.h.b16 %v592
    %v874 = vunpack.c.l.b16 %v593
    %v875 = vunpack.c.h.b16 %v593
    %v876 = vunpack.c.l.b16 %v594
    %v877 = vunpack.c.h.b16 %v594
    %v878 = vunpack.c.l.b16 %v595
    %v879 = vunpack.c.h.b16 %v595
    %v880 = vunpack.c.l.b16 %v596
    %v881 = vunpack.c.h.b16 %v596
    %v882 = vunpack.c.l.b16 %v597
    %v883 = vunpack.c.h.b16 %v597
    %v884 = vunpack.c.l.b16 %v598
    %v885 = vunpack.c.h.b16 %v598
    %v886 = vunpack.c.l.b16 %v599
    %v887 = vunpack.c.h.b16 %v599
    %v888 = vunpack.c.l.b16 %v600
    %v889 = vunpack.c.h.b16 %v600
    %v890 = vunpack.c.l.b16 %v601
    %v891 = vunpack.c.h.b16 %v601
    %v892 = vunpack.c.l.b16 %v602
    %v893 = vunpack.c.h.b16 %v602
    %v894 = vunpack.c.l.b16 %v603
    %v895 = vunpack.c.h.b16 %v603
    %v896 = vunpack.c.l.b16 %v604
    %v897 = vunpack.c.h.b16 %v604
    %v898 = vunpack.c.l.b16 %v605
    %v899 = vunpack.c.h.b16 %v605
    %v900 = vunpack.c.l.b16 %v606
    %v901 = vunpack.c.h.b16 %v606
    %v902 = vunpack.c.l.b16 %v607
    %v903 = vunpack.c.h.b16 %v607
    %v904 = vunpack.c.l.b16 %v608
    %v905 = vunpack.c.h.b16 %v608
    %v906 = vunpack.c.l.b16 %v609
    %v907 = vunpack.c.h.b16 %v609
    %v908 = vunpack.c.l.b16 %v610
    %v909 = vunpack.c.h.b16 %v610
    %v910 = vunpack.c.l.b16 %v611
    %v911 = vunpack.c.h.b16 %v611
    %v912 = vunpack.c.l.b16 %v612
    %v913 = vunpack.c.h.b16 %v612
    %v914 = vunpack.c.l.b16 %v613
    %v915 = vunpack.c.h.b16 %v613
    %v916 = vunpack.c.l.b16 %v614
    %v917 = vunpack.c.h.b16 %v614
    %v918 = vunpack.c.l.b16 %v615
    %v919 = vunpack.c.h.b16 %v615
    %v920 = vpack.c.b16 %v858, %v856
    %v921 = vpack.c.b16 %v859, %v857
    %v922 = vpack.c.b16 %v862, %v860
    %v923 = vpack.c.b16 %v863, %v861
    %v924 = vpack.c.b16 %v866, %v864
    %v925 = vpack.c.b16 %v867, %v865
    %v926 = vpack.c.b16 %v870, %v868
    %v927 = vpack.c.b16 %v871, %v869
    %v928 = vpack.c.b16 %v874, %v872
    %v929 = vpack.c.b16 %v875, %v873
    %v930 = vpack.c.b16 %v878, %v876
    %v931 = vpack.c.b16 %v879, %v877
    %v932 = vpack.c.b16 %v882, %v880
    %v933 = vpack.c.b16 %v883, %v881
    %v934 = vpack.c.b16 %v886, %v884
    %v935 = vpack.c.b16 %v887, %v885
    %v936 = vpack.c.b16 %v890, %v888
    %v937 = vpack.c.b16 %v891, %v889
    %v938 = vpack.c.b16 %v894, %v892
    %v939 = vpack.c.b16 %v895, %v893
    %v940 = vpack.c.b16 %v898, %v896
    %v941 = vpack.c.b16 %v899, %v897
    %v942 = vpack.c.b16 %v902, %v900
    %v943 = vpack.c.b16 %v903, %v901
    %v944 = vpack.c.b16 %v906, %v904
    %v945 = vpack.c.b16 %v907, %v905
    %v946 = vpack.c.b16 %v910, %v908
    %v947 = vpack.c.b16 %v911, %v909
    %v948 = vpack.c.b16 %v914, %v912
    %v949 = vpack.c.b16 %v915, %v913
    %v950 = vpack.c.b16 %v918, %v916
    %v951 = vpack.c.b16 %v919, %v917
    %984 = vmatprep.subr.bf16.mxu0 0
    %985 = vmatpush1.bf16.msra.mxu0 %v616
    %986 = vmatprep.subr.bf16.mxu0 0
    %987 = vmatpush1.bf16.msra.mxu0 %v617
    %988 = vmatprep.subr.bf16.mxu0 0
    %989 = vmatpush1.bf16.msra.mxu0 %v618
    %990 = vmatprep.subr.bf16.mxu0 0
    %991 = vmatpush1.bf16.msra.mxu0 %v619
    %992 = vmatprep.subr.bf16.mxu0 0
    %993 = vmatpush1.bf16.msra.mxu0 %v620
    %994 = vmatprep.subr.bf16.mxu0 0
    %995 = vmatpush1.bf16.msra.mxu0 %v621
    %996 = vmatprep.subr.bf16.mxu0 0
    %997 = vmatpush1.bf16.msra.mxu0 %v622
    %998 = vmatprep.subr.bf16.mxu0 0
    %999 = vmatpush1.bf16.msra.mxu0 %v623
    %1000 = vmatprep.subr.bf16.mxu0 0
    %1001 = vmatpush1.bf16.msra.mxu0 %v624
    %1002 = vmatprep.subr.bf16.mxu0 0
    %1003 = vmatpush1.bf16.msra.mxu0 %v625
    %1004 = vmatprep.subr.bf16.mxu0 0
    %1005 = vmatpush1.bf16.msra.mxu0 %v626
    %1006 = vmatprep.subr.bf16.mxu0 0
    %1007 = vmatpush1.bf16.msra.mxu0 %v627
    %1008 = vmatprep.subr.bf16.mxu0 0
    %1009 = vmatpush1.bf16.msra.mxu0 %v628
    %1010 = vmatprep.subr.bf16.mxu0 0
    %1011 = vmatpush1.bf16.msra.mxu0 %v629
    %1012 = vmatprep.subr.bf16.mxu0 0
    %1013 = vmatpush1.bf16.msra.mxu0 %v630
    %1014 = vmatprep.subr.bf16.mxu0 0
    %1015 = vmatpush1.bf16.msra.mxu0 %v631
    %1016 = vmatprep.mubr.bf16.mxu0 %v921
    %1017 = vmatmul.mubr.bf16.gmra.mrb[0].mxu0 %v920
    %v1018 = vpop.f32.mrb[0].mxu0
    %v1019 = vadd.f32 %v667, %v1018
    %v1020 = vpop.f32.mrb[0].mxu0
    %v1021 = vpop.f32.mrb[0].mxu0
    %v1022 = vadd.f32 %v672, %v1021
    %v1023 = vpop.f32.mrb[0].mxu0
    %1024 = vmatprep.mubr.bf16.mxu0 %v923
    %1025 = vmatmul.mubr.bf16.gmra.mrb[0].mxu0 %v922
    %v1026 = vpop.f32.mrb[0].mxu0
    %v1027 = vadd.f32 %v677, %v1026
    %v1028 = vpop.f32.mrb[0].mxu0
    %v1029 = vpop.f32.mrb[0].mxu0
    %v1030 = vadd.f32 %v682, %v1029
    %v1031 = vpop.f32.mrb[0].mxu0
    %1032 = vmatprep.mubr.bf16.mxu0 %v925
    %1033 = vmatmul.mubr.bf16.gmra.mrb[0].mxu0 %v924
    %v1034 = vpop.f32.mrb[0].mxu0
    %v1035 = vadd.f32 %v687, %v1034
    %v1036 = vpop.f32.mrb[0].mxu0
    %v1037 = vpop.f32.mrb[0].mxu0
    %v1038 = vadd.f32 %v692, %v1037
    %v1039 = vpop.f32.mrb[0].mxu0
    %1040 = vmatprep.mubr.bf16.mxu0 %v927
    %1041 = vmatmul.mubr.bf16.gmra.mrb[0].mxu0 %v926
    %v1042 = vpop.f32.mrb[0].mxu0
    %v1043 = vadd.f32 %v697, %v1042
    %v1044 = vpop.f32.mrb[0].mxu0
    %v1045 = vpop.f32.mrb[0].mxu0
    %v1046 = vadd.f32 %v702, %v1045
    %v1047 = vpop.f32.mrb[0].mxu0
    %1048 = vmatprep.mubr.bf16.mxu0 %v929
    %1049 = vmatmul.mubr.bf16.gmra.mrb[0].mxu0 %v928
    %v1050 = vpop.f32.mrb[0].mxu0
    %v1051 = vadd.f32 %v707, %v1050
    %v1052 = vpop.f32.mrb[0].mxu0
    %v1053 = vpop.f32.mrb[0].mxu0
    %v1054 = vadd.f32 %v712, %v1053
    %v1055 = vpop.f32.mrb[0].mxu0
    %1056 = vmatprep.mubr.bf16.mxu0 %v931
    %1057 = vmatmul.mubr.bf16.gmra.mrb[0].mxu0 %v930
    %v1058 = vpop.f32.mrb[0].mxu0
    %v1059 = vadd.f32 %v717, %v1058
    %v1060 = vpop.f32.mrb[0].mxu0
    %v1061 = vpop.f32.mrb[0].mxu0
    %v1062 = vadd.f32 %v722, %v1061
    %v1063 = vpop.f32.mrb[0].mxu0
    %1064 = vmatprep.mubr.bf16.mxu0 %v933
    %1065 = vmatmul.mubr.bf16.gmra.mrb[0].mxu0 %v932
    %v1066 = vpop.f32.mrb[0].mxu0
    %v1067 = vadd.f32 %v727, %v1066
    %v1068 = vpop.f32.mrb[0].mxu0
    %v1069 = vpop.f32.mrb[0].mxu0
    %v1070 = vadd.f32 %v732, %v1069
    %v1071 = vpop.f32.mrb[0].mxu0
    %1072 = vmatprep.mubr.bf16.mxu0 %v935
    %1073 = vmatmul.mubr.bf16.gmra.mrb[0].mxu0 %v934
    %v1074 = vpop.f32.mrb[0].mxu0
    %v1075 = vadd.f32 %v737, %v1074
    %v1076 = vpop.f32.mrb[0].mxu0
    %v1077 = vpop.f32.mrb[0].mxu0
    %v1078 = vadd.f32 %v742, %v1077
    %v1079 = vpop.f32.mrb[0].mxu0
    %1080 = vmatprep.mubr.bf16.mxu0 %v937
    %1081 = vmatmul.mubr.bf16.gmra.mrb[0].mxu0 %v936
    %v1082 = vpop.f32.mrb[0].mxu0
    %v1083 = vadd.f32 %v747, %v1082
    %v1084 = vpop.f32.mrb[0].mxu0
    %v1085 = vpop.f32.mrb[0].mxu0
    %v1086 = vadd.f32 %v752, %v1085
    %v1087 = vpop.f32.mrb[0].mxu0
    %1088 = vmatprep.mubr.bf16.mxu0 %v939
    %1089 = vmatmul.mubr.bf16.gmra.mrb[0].mxu0 %v938
    %v1090 = vpop.f32.mrb[0].mxu0
    %v1091 = vadd.f32 %v757, %v1090
    %v1092 = vpop.f32.mrb[0].mxu0
    %v1093 = vpop.f32.mrb[0].mxu0
    %v1094 = vadd.f32 %v762, %v1093
    %v1095 = vpop.f32.mrb[0].mxu0
    %1096 = vmatprep.mubr.bf16.mxu0 %v941
    %1097 = vmatmul.mubr.bf16.gmra.mrb[0].mxu0 %v940
    %v1098 = vpop.f32.mrb[0].mxu0
    %v1099 = vadd.f32 %v767, %v1098
    %v1100 = vpop.f32.mrb[0].mxu0
    %v1101 = vpop.f32.mrb[0].mxu0
    %v1102 = vadd.f32 %v772, %v1101
    %v1103 = vpop.f32.mrb[0].mxu0
    %1104 = vmatprep.mubr.bf16.mxu0 %v943
    %1105 = vmatmul.mubr.bf16.gmra.mrb[0].mxu0 %v942
    %v1106 = vpop.f32.mrb[0].mxu0
    %v1107 = vadd.f32 %v777, %v1106
    %v1108 = vpop.f32.mrb[0].mxu0
    %v1109 = vpop.f32.mrb[0].mxu0
    %v1110 = vadd.f32 %v782, %v1109
    %v1111 = vpop.f32.mrb[0].mxu0
    %1112 = vmatprep.mubr.bf16.mxu0 %v945
    %1113 = vmatmul.mubr.bf16.gmra.mrb[0].mxu0 %v944
    %v1114 = vpop.f32.mrb[0].mxu0
    %v1115 = vadd.f32 %v787, %v1114
    %v1116 = vpop.f32.mrb[0].mxu0
    %v1117 = vpop.f32.mrb[0].mxu0
    %v1118 = vadd.f32 %v792, %v1117
    %v1119 = vpop.f32.mrb[0].mxu0
    %1120 = vmatprep.mubr.bf16.mxu0 %v947
    %1121 = vmatmul.mubr.bf16.gmra.mrb[0].mxu0 %v946
    %v1122 = vpop.f32.mrb[0].mxu0
    %v1123 = vadd.f32 %v797, %v1122
    %v1124 = vpop.f32.mrb[0].mxu0
    %v1125 = vpop.f32.mrb[0].mxu0
    %v1126 = vadd.f32 %v802, %v1125
    %v1127 = vpop.f32.mrb[0].mxu0
    %1128 = vmatprep.mubr.bf16.mxu0 %v949
    %1129 = vmatmul.mubr.bf16.gmra.mrb[0].mxu0 %v948
    %v1130 = vpop.f32.mrb[0].mxu0
    %v1131 = vadd.f32 %v807, %v1130
    %v1132 = vpop.f32.mrb[0].mxu0
    %v1133 = vpop.f32.mrb[0].mxu0
    %v1134 = vadd.f32 %v812, %v1133
    %v1135 = vpop.f32.mrb[0].mxu0
    %1136 = vmatprep.mubr.bf16.mxu0 %v951
    %1137 = vmatmul.mubr.bf16.gmra.mrb[0].mxu0 %v950
    %v1138 = vpop.f32.mrb[0].mxu0
    %v1139 = vadd.f32 %v817, %v1138
    %v1140 = vpop.f32.mrb[0].mxu0
    %v1141 = vpop.f32.mrb[0].mxu0
    %v1142 = vadd.f32 %v822, %v1141
    %v1143 = vpop.f32.mrb[0].mxu0
    %1144 = vdwg.mxu0
    %v1145 = vmax.f32 %v1019, 0.0
    %v1146 = vmax.f32 %v1022, 0.0
    %v1147 = vmax.f32 %v1027, 0.0
    %v1148 = vmax.f32 %v1030, 0.0
    %v1149 = vmax.f32 %v1035, 0.0
    %v1150 = vmax.f32 %v1038, 0.0
    %v1151 = vmax.f32 %v1043, 0.0
    %v1152 = vmax.f32 %v1046, 0.0
    %v1153 = vmax.f32 %v1051, 0.0
    %v1154 = vmax.f32 %v1054, 0.0
    %v1155 = vmax.f32 %v1059, 0.0
    %v1156 = vmax.f32 %v1062, 0.0
    %v1157 = vmax.f32 %v1067, 0.0
    %v1158 = vmax.f32 %v1070, 0.0
    %v1159 = vmax.f32 %v1075, 0.0
    %v1160 = vmax.f32 %v1078, 0.0
    %v1161 = vmax.f32 %v1083, 0.0
    %v1162 = vmax.f32 %v1086, 0.0
    %v1163 = vmax.f32 %v1091, 0.0
    %v1164 = vmax.f32 %v1094, 0.0
    %v1165 = vmax.f32 %v1099, 0.0
    %v1166 = vmax.f32 %v1102, 0.0
    %v1167 = vmax.f32 %v1107, 0.0
    %v1168 = vmax.f32 %v1110, 0.0
    %v1169 = vmax.f32 %v1115, 0.0
    %v1170 = vmax.f32 %v1118, 0.0
    %v1171 = vmax.f32 %v1123, 0.0
    %v1172 = vmax.f32 %v1126, 0.0
    %v1173 = vmax.f32 %v1131, 0.0
    %v1174 = vmax.f32 %v1134, 0.0
    %v1175 = vmax.f32 %v1139, 0.0
    %v1176 = vmax.f32 %v1142, 0.0
    %v1177 = vld [vmem:[%s5] sm:$0xff]
    %v1178 = vld [vmem:[%s5 + $0x8] sm:$0xff]
    %v1179 = vld [vmem:[%s5 + $0x10] sm:$0xff]
    %v1180 = vld [vmem:[%s5 + $0x18] sm:$0xff]
    %v1181 = vld [vmem:[%s5 + $0x20] sm:$0xff]
    %v1182 = vld [vmem:[%s5 + $0x28] sm:$0xff]
    %v1183 = vld [vmem:[%s5 + $0x30] sm:$0xff]
    %v1184 = vld [vmem:[%s5 + $0x38] sm:$0xff]
    %v1185 = vld [vmem:[%s5 + $0x40] sm:$0xff]
    %v1186 = vld [vmem:[%s5 + $0x48] sm:$0xff]
    %v1187 = vld [vmem:[%s5 + $0x50] sm:$0xff]
    %v1188 = vld [vmem:[%s5 + $0x58] sm:$0xff]
    %v1189 = vld [vmem:[%s5 + $0x60] sm:$0xff]
    %v1190 = vld [vmem:[%s5 + $0x68] sm:$0xff]
    %v1191 = vld [vmem:[%s5 + $0x70] sm:$0xff]
    %v1192 = vld [vmem:[%s5 + $0x78] sm:$0xff]
    %v1193 = vld [vmem:[%s5 + $0x80] sm:$0xff]
    %v1194 = vld [vmem:[%s5 + $0x88] sm:$0xff]
    %v1195 = vld [vmem:[%s5 + $0x90] sm:$0xff]
    %v1196 = vld [vmem:[%s5 + $0x98] sm:$0xff]
    %v1197 = vld [vmem:[%s5 + $0xa0] sm:$0xff]
    %v1198 = vld [vmem:[%s5 + $0xa8] sm:$0xff]
    %v1199 = vld [vmem:[%s5 + $0xb0] sm:$0xff]
    %v1200 = vld [vmem:[%s5 + $0xb8] sm:$0xff]
    %v1201 = vld [vmem:[%s5 + $0xc0] sm:$0xff]
    %v1202 = vld [vmem:[%s5 + $0xc8] sm:$0xff]
    %v1203 = vld [vmem:[%s5 + $0xd0] sm:$0xff]
    %v1204 = vld [vmem:[%s5 + $0xd8] sm:$0xff]
    %v1205 = vld [vmem:[%s5 + $0xe0] sm:$0xff]
    %v1206 = vld [vmem:[%s5 + $0xe8] sm:$0xff]
    %v1207 = vld [vmem:[%s5 + $0xf0] sm:$0xff]
    %v1208 = vld [vmem:[%s5 + $0xf8] sm:$0xff]
    %1210 = vset.pattern.permute.xlu0 0
    %1211 = vperm.xlu0 %1210, %v1177
    %v1212 = vpop.permute.xlu0 %1211
    %1215 = vset.pattern.permute.xlu0 0
    %1216 = vperm.xlu0 %1215, %v1178
    %v1217 = vpop.permute.xlu0 %1216
    %1220 = vset.pattern.permute.xlu0 0
    %1221 = vperm.xlu0 %1220, %v1179
    %v1222 = vpop.permute.xlu0 %1221
    %1225 = vset.pattern.permute.xlu0 0
    %1226 = vperm.xlu0 %1225, %v1180
    %v1227 = vpop.permute.xlu0 %1226
    %1230 = vset.pattern.permute.xlu0 0
    %1231 = vperm.xlu0 %1230, %v1181
    %v1232 = vpop.permute.xlu0 %1231
    %1235 = vset.pattern.permute.xlu0 0
    %1236 = vperm.xlu0 %1235, %v1182
    %v1237 = vpop.permute.xlu0 %1236
    %1240 = vset.pattern.permute.xlu0 0
    %1241 = vperm.xlu0 %1240, %v1183
    %v1242 = vpop.permute.xlu0 %1241
    %1245 = vset.pattern.permute.xlu0 0
    %1246 = vperm.xlu0 %1245, %v1184
    %v1247 = vpop.permute.xlu0 %1246
    %1250 = vset.pattern.permute.xlu0 0
    %1251 = vperm.xlu0 %1250, %v1185
    %v1252 = vpop.permute.xlu0 %1251
    %1255 = vset.pattern.permute.xlu0 0
    %1256 = vperm.xlu0 %1255, %v1186
    %v1257 = vpop.permute.xlu0 %1256
    %1260 = vset.pattern.permute.xlu0 0
    %1261 = vperm.xlu0 %1260, %v1187
    %v1262 = vpop.permute.xlu0 %1261
    %1265 = vset.pattern.permute.xlu0 0
    %1266 = vperm.xlu0 %1265, %v1188
    %v1267 = vpop.permute.xlu0 %1266
    %1270 = vset.pattern.permute.xlu0 0
    %1271 = vperm.xlu0 %1270, %v1189
    %v1272 = vpop.permute.xlu0 %1271
    %1275 = vset.pattern.permute.xlu0 0
    %1276 = vperm.xlu0 %1275, %v1190
    %v1277 = vpop.permute.xlu0 %1276
    %1280 = vset.pattern.permute.xlu0 0
    %1281 = vperm.xlu0 %1280, %v1191
    %v1282 = vpop.permute.xlu0 %1281
    %1285 = vset.pattern.permute.xlu0 0
    %1286 = vperm.xlu0 %1285, %v1192
    %v1287 = vpop.permute.xlu0 %1286
    %1290 = vset.pattern.permute.xlu0 0
    %1291 = vperm.xlu0 %1290, %v1193
    %v1292 = vpop.permute.xlu0 %1291
    %1295 = vset.pattern.permute.xlu0 0
    %1296 = vperm.xlu0 %1295, %v1194
    %v1297 = vpop.permute.xlu0 %1296
    %1300 = vset.pattern.permute.xlu0 0
    %1301 = vperm.xlu0 %1300, %v1195
    %v1302 = vpop.permute.xlu0 %1301
    %1305 = vset.pattern.permute.xlu0 0
    %1306 = vperm.xlu0 %1305, %v1196
    %v1307 = vpop.permute.xlu0 %1306
    %1310 = vset.pattern.permute.xlu0 0
    %1311 = vperm.xlu0 %1310, %v1197
    %v1312 = vpop.permute.xlu0 %1311
    %1315 = vset.pattern.permute.xlu0 0
    %1316 = vperm.xlu0 %1315, %v1198
    %v1317 = vpop.permute.xlu0 %1316
    %1320 = vset.pattern.permute.xlu0 0
    %1321 = vperm.xlu0 %1320, %v1199
    %v1322 = vpop.permute.xlu0 %1321
    %1325 = vset.pattern.permute.xlu0 0
    %1326 = vperm.xlu0 %1325, %v1200
    %v1327 = vpop.permute.xlu0 %1326
    %1330 = vset.pattern.permute.xlu0 0
    %1331 = vperm.xlu0 %1330, %v1201
    %v1332 = vpop.permute.xlu0 %1331
    %1335 = vset.pattern.permute.xlu0 0
    %1336 = vperm.xlu0 %1335, %v1202
    %v1337 = vpop.permute.xlu0 %1336
    %1340 = vset.pattern.permute.xlu0 0
    %1341 = vperm.xlu0 %1340, %v1203
    %v1342 = vpop.permute.xlu0 %1341
    %1345 = vset.pattern.permute.xlu0 0
    %1346 = vperm.xlu0 %1345, %v1204
    %v1347 = vpop.permute.xlu0 %1346
    %1350 = vset.pattern.permute.xlu0 0
    %1351 = vperm.xlu0 %1350, %v1205
    %v1352 = vpop.permute.xlu0 %1351
    %1355 = vset.pattern.permute.xlu0 0
    %1356 = vperm.xlu0 %1355, %v1206
    %v1357 = vpop.permute.xlu0 %1356
    %1360 = vset.pattern.permute.xlu0 0
    %1361 = vperm.xlu0 %1360, %v1207
    %v1362 = vpop.permute.xlu0 %1361
    %1365 = vset.pattern.permute.xlu0 0
    %1366 = vperm.xlu0 %1365, %v1208
    %v1367 = vpop.permute.xlu0 %1366
    %v1369 = vmul.f32 %v1145, %v1212
    %v1370 = vmul.f32 %v1146, %v1217
    %v1371 = vmul.f32 %v1147, %v1222
    %v1372 = vmul.f32 %v1148, %v1227
    %v1373 = vmul.f32 %v1149, %v1232
    %v1374 = vmul.f32 %v1150, %v1237
    %v1375 = vmul.f32 %v1151, %v1242
    %v1376 = vmul.f32 %v1152, %v1247
    %v1377 = vmul.f32 %v1153, %v1252
    %v1378 = vmul.f32 %v1154, %v1257
    %v1379 = vmul.f32 %v1155, %v1262
    %v1380 = vmul.f32 %v1156, %v1267
    %v1381 = vmul.f32 %v1157, %v1272
    %v1382 = vmul.f32 %v1158, %v1277
    %v1383 = vmul.f32 %v1159, %v1282
    %v1384 = vmul.f32 %v1160, %v1287
    %v1385 = vmul.f32 %v1161, %v1292
    %v1386 = vmul.f32 %v1162, %v1297
    %v1387 = vmul.f32 %v1163, %v1302
    %v1388 = vmul.f32 %v1164, %v1307
    %v1389 = vmul.f32 %v1165, %v1312
    %v1390 = vmul.f32 %v1166, %v1317
    %v1391 = vmul.f32 %v1167, %v1322
    %v1392 = vmul.f32 %v1168, %v1327
    %v1393 = vmul.f32 %v1169, %v1332
    %v1394 = vmul.f32 %v1170, %v1337
    %v1395 = vmul.f32 %v1171, %v1342
    %v1396 = vmul.f32 %v1172, %v1347
    %v1397 = vmul.f32 %v1173, %v1352
    %v1398 = vmul.f32 %v1174, %v1357
    %v1399 = vmul.f32 %v1175, %v1362
    %v1400 = vmul.f32 %v1176, %v1367
    %v1401 = vadd.f32 %v1369, %v1370
    %v1402 = vadd.f32 %v1401, %v1371
    %v1403 = vadd.f32 %v1402, %v1372
    %v1404 = vadd.f32 %v1403, %v1373
    %v1405 = vadd.f32 %v1404, %v1374
    %v1406 = vadd.f32 %v1405, %v1375
    %v1407 = vadd.f32 %v1406, %v1376
    %v1408 = vadd.f32 %v1407, %v1377
    %v1409 = vadd.f32 %v1408, %v1378
    %v1410 = vadd.f32 %v1409, %v1379
    %v1411 = vadd.f32 %v1410, %v1380
    %v1412 = vadd.f32 %v1411, %v1381
    %v1413 = vadd.f32 %v1412, %v1382
    %v1414 = vadd.f32 %v1413, %v1383
    %v1415 = vadd.f32 %v1414, %v1384
    %v1416 = vadd.f32 %v1415, %v1385
    %v1417 = vadd.f32 %v1416, %v1386
    %v1418 = vadd.f32 %v1417, %v1387
    %v1419 = vadd.f32 %v1418, %v1388
    %v1420 = vadd.f32 %v1419, %v1389
    %v1421 = vadd.f32 %v1420, %v1390
    %v1422 = vadd.f32 %v1421, %v1391
    %v1423 = vadd.f32 %v1422, %v1392
    %v1424 = vadd.f32 %v1423, %v1393
    %v1425 = vadd.f32 %v1424, %v1394
    %v1426 = vadd.f32 %v1425, %v1395
    %v1427 = vadd.f32 %v1426, %v1396
    %v1428 = vadd.f32 %v1427, %v1397
    %v1429 = vadd.f32 %v1428, %v1398
    %v1430 = vadd.f32 %v1429, %v1399
    %v1431 = vadd.f32 %v1430, %v1400
    %v1432 = vrot.slane %v1431, 4
    %v1433 = vadd.f32 %v1431, %v1432
    %v1434 = vrot.slane %v1433, 2
    %v1435 = vadd.f32 %v1433, %v1434
    %v1436 = vrot.slane %v1435, 1
    %v1437 = vadd.f32 %v1435, %v1436
    %v1438 = vld [vmem:[#allocation2] sm:$0x1]
    %1440 = vset.pattern.permute.xlu0 0
    %1441 = vperm.xlu0 %1440, %v1438
    %v1442 = vpop.permute.xlu0 %1441
    %v1444 = vlaneseq
    %v1445 = vshrl.u32 %v1444, 7
    %v1446 = vsub.s32 0, %v1445
    %v1447 = vrot.slane %v1442, %v1446
    %v1448 = vadd.f32 %v1437, %v1447
    %1449 = vst [vmem:[#allocation3] sm:$0x1] %v1448
    // Predicated region
    $region30: #{tpu_custom_call.1} parent=1 // pred_check
      _
    $region31: #{tpu_custom_call.1} parent=1 // pred_check_branch
      %1451 = sbr.rel (0) target = $region33
    $region32: #{tpu_custom_call.1} parent=1 // pred_region
      %s1453 = ssub.s32 16, 16
      %1454 = vsyncadd [#allocation4], %s1453
      %s1456 = sshll.u32 [#allocation3], 4
      %s1457 = int_to_ptr.vmem [resolvable:$true] %s1456
      %1459 = dma.vmem_to_hbm [thread:$0]  %s1457, 16, %s7, [#allocation4]
    $region33: #{tpu_custom_call.1} parent=1 // pred_fallthru
      _
    // Predicated region
    $region34: #{tpu_custom_call.1} parent=1 // pred_check
      _
    $region35: #{tpu_custom_call.1} parent=1 // pred_check_branch
      %1461 = sbr.rel (0) target = $region37
    $region36: #{tpu_custom_call.1} parent=1 // pred_region
      %1462 = dma.done [#allocation4], 16
    $region37: #{tpu_custom_call.1} parent=1 // pred_fallthru
      _
    %1463 = vsyncpa [#allocation4], 1

</llo_original>
